<compile_context>
chip_gen: v7x
topology: tpu7x:2x2x1
jax: 0.10.0
libtpu: 0.0.40
codegen_flags: <defaults>
</compile_context>

<pallas_src>
import jax
import jax.numpy as jnp
from jax.experimental import pallas as pl
from jax.experimental.pallas import tpu as pltpu


def _affine_const_kernel(x_ref, s_ref, t_ref, z_ref):
    # s_ref/t_ref are (1, L) blocks resident across the grid; exp -> EUP slot.
    scale = jnp.exp(s_ref[...])            # (1, L)
    shift = t_ref[...]                     # (1, L)
    # Hot path: one vmul + one vadd per element, broadcast over the row tile.
    z_ref[...] = (x_ref[...] * scale + shift).astype(z_ref.dtype)


def _choose_tile_rows(rows, bytes_per_row, target_block_bytes):
    """Pick a sublane tile: multiple of 8 rows (or the full row count)."""
    if rows <= 8:
        return rows
    tile = target_block_bytes // max(bytes_per_row, 1)
    tile = max(8, min(rows, tile))
    tile = (tile // 8) * 8
    if tile >= rows:
        return rows
    return tile


def affine_constant_flow_forward(x, s, t, *, target_block_bytes=2 * 1024 * 1024):
    """Pallas forward of AffineConstantFlow.

    Args:
      x: (N, dim) float32 (or bf16) activations
      s: (1, dim) float32 scale log-params
      t: (1, dim) float32 shift params
    Returns:
      z: (N, dim) same dtype as x
      log_det: (1,) float32  == sum(s, dim=1)
    """
    n, dim = x.shape
    out_dtype = x.dtype

    # log_det depends only on s -> compute outside the kernel (no per-step
    # redundant reduce/store inside the tiled grid).
    log_det = jnp.sum(s, axis=1)  # (1,)

    # Lane-dense repack for small feature dims: last dim becomes 128 so stores
    # are full-width instead of masked partial stores.
    lane_dense = (dim < 128) and (128 % dim == 0) and ((n * dim) % 128 == 0)
    if lane_dense:
        reps = 128 // dim
        x2 = x.reshape(n * dim // 128, 128)   # pure layout change (row-major)
        s2 = jnp.tile(s, (1, reps))           # (1, 128), matches repack pattern
        t2 = jnp.tile(t, (1, reps))
    else:
        x2, s2, t2 = x, s, t
    rows, cols = x2.shape

    bytes_per_row = cols * x2.dtype.itemsize
    tile_rows = _choose_tile_rows(rows, bytes_per_row, target_block_bytes)
    grid = (pl.cdiv(rows, tile_rows),)

    itemsize = jnp.dtype(out_dtype).itemsize
    cost = pl.CostEstimate(
        flops=2 * n * dim,
        transcendentals=dim,
        bytes_accessed=2 * n * dim * itemsize + 2 * dim * s.dtype.itemsize,
    )

    z2 = pl.pallas_call(
        _affine_const_kernel,
        out_shape=jax.ShapeDtypeStruct((rows, cols), out_dtype),
        grid=grid,
        in_specs=[
            pl.BlockSpec((tile_rows, cols), lambda i: (i, 0)),  # x tile
            pl.BlockSpec((1, cols), lambda i: (0, 0)),          # s (resident)
            pl.BlockSpec((1, cols), lambda i: (0, 0)),          # t (resident)
        ],
        out_specs=pl.BlockSpec((tile_rows, cols), lambda i: (i, 0)),
        compiler_params=pltpu.CompilerParams(
            dimension_semantics=("parallel",)),
        cost_estimate=cost,
    )(x2, s2, t2)

    z = z2.reshape(n, dim) if lane_dense else z2
    return z, log_det


if __name__ == "__main__":
    key = jax.random.PRNGKey(0)
    kx, ks, kt = jax.random.split(key, 3)

    # Small shape consistent with the module (batch of dense feature vectors).
    batch, dim = 8, 32
    x = jax.random.normal(kx, (batch, dim), dtype=jnp.float32)
    s = jax.random.normal(ks, (1, dim), dtype=jnp.float32)   # nn.Parameter(randn(1, dim))
    t = jax.random.normal(kt, (1, dim), dtype=jnp.float32)

    z, log_det = affine_constant_flow_forward(x, s, t)
    jax.block_until_ready((z, log_det))

    z_ref = x * jnp.exp(s) + t
    ld_ref = jnp.sum(s, axis=1)
    assert z.shape == (batch, dim) and log_det.shape == (1,)
    assert jnp.allclose(z, z_ref, atol=1e-6, rtol=1e-6)
    assert jnp.allclose(log_det, ld_ref, atol=1e-6, rtol=1e-6)

    # Secondary check: exercises the tiled multi-step grid path (dim >= 128)
    # and a ragged batch (not a multiple of the 8-row tile quantum).
    batch2, dim2 = 4100, 256
    k2x, k2s, k2t = jax.random.split(jax.random.PRNGKey(1), 3)
    x2 = jax.random.normal(k2x, (batch2, dim2), dtype=jnp.float32)
    s2 = jax.random.normal(k2s, (1, dim2), dtype=jnp.float32)
    t2 = jax.random.normal(k2t, (1, dim2), dtype=jnp.float32)
    z2, ld2 = affine_constant_flow_forward(x2, s2, t2)
    jax.block_until_ready((z2, ld2))
    assert jnp.allclose(z2, x2 * jnp.exp(s2) + t2, atol=1e-5, rtol=1e-5)
    assert jnp.allclose(ld2, jnp.sum(s2, axis=1), atol=1e-4, rtol=1e-5)

    print("KERNEL_OK")
</pallas_src>

<mosaic_0001>
module attributes {stable_mosaic.version = 11 : i64} {
  func.func @_affine_const_kernel(%arg0: i32, %arg1: memref<2x128xf32, #tpu.memory_space<vmem>>, %arg2: memref<1x128xf32, #tpu.memory_space<vmem>>, %arg3: memref<1x128xf32, #tpu.memory_space<vmem>>, %arg4: memref<2x128xf32, #tpu.memory_space<vmem>>) attributes {dimension_semantics = [#tpu.dimension_semantics<parallel>], iteration_bounds = array<i64: 1>, scalar_prefetch = 0 : i64, scratch_operands = 0 : i64, tpu.core_type = #tpu.core_type<tc>, window_params = [{transform_indices = @transform_0, window_bounds = array<i64: 2, 128>}, {pipeline_mode = #tpu.pipeline_mode<synchronous>, transform_indices = @transform_1, window_bounds = array<i64: 1, 128>}, {pipeline_mode = #tpu.pipeline_mode<synchronous>, transform_indices = @transform_2, window_bounds = array<i64: 1, 128>}, {transform_indices = @transform_3, window_bounds = array<i64: 2, 128>}]} {
    %c0 = arith.constant 0 : index
    %c0_0 = arith.constant 0 : index
    %0 = vector.load %arg2[%c0, %c0_0] : memref<1x128xf32, #tpu.memory_space<vmem>>, vector<1x128xf32>
    %1 = math.exp %0 : vector<1x128xf32>
    %c0_1 = arith.constant 0 : index
    %c0_2 = arith.constant 0 : index
    %2 = vector.load %arg3[%c0_1, %c0_2] : memref<1x128xf32, #tpu.memory_space<vmem>>, vector<1x128xf32>
    %c0_3 = arith.constant 0 : index
    %c0_4 = arith.constant 0 : index
    %3 = vector.load %arg1[%c0_3, %c0_4] : memref<2x128xf32, #tpu.memory_space<vmem>>, vector<2x128xf32>
    %4 = vector.broadcast %1 : vector<1x128xf32> to vector<2x128xf32>
    %5 = arith.mulf %3, %4 : vector<2x128xf32>
    %6 = vector.broadcast %2 : vector<1x128xf32> to vector<2x128xf32>
    %7 = arith.addf %5, %6 : vector<2x128xf32>
    %c0_5 = arith.constant 0 : index
    %c0_6 = arith.constant 0 : index
    %8 = vector.load %arg4[%c0_5, %c0_6] : memref<2x128xf32, #tpu.memory_space<vmem>>, vector<2x128xf32>
    tpu.vector_store %arg4[%c0_5, %c0_6], %7 {strides = array<i32>} : memref<2x128xf32, #tpu.memory_space<vmem>>, vector<2x128xf32>,
    return
  }
  func.func @transform_0(%arg0: i32) -> (i32, i32) {
    %c0_i32 = arith.constant 0 : i32
    %c0_i32_0 = arith.constant 0 : i32
    return %arg0, %c0_i32 : i32, i32
  }
  func.func @transform_1(%arg0: i32) -> (i32, i32) {
    %c0_i32 = arith.constant 0 : i32
    %c0_i32_0 = arith.constant 0 : i32
    %c0_i32_1 = arith.constant 0 : i32
    return %c0_i32, %c0_i32_0 : i32, i32
  }
  func.func @transform_2(%arg0: i32) -> (i32, i32) {
    %c0_i32 = arith.constant 0 : i32
    %c0_i32_0 = arith.constant 0 : i32
    %c0_i32_1 = arith.constant 0 : i32
    return %c0_i32, %c0_i32_0 : i32, i32
  }
  func.func @transform_3(%arg0: i32) -> (i32, i32) {
    %c0_i32 = arith.constant 0 : i32
    %c0_i32_0 = arith.constant 0 : i32
    return %arg0, %c0_i32 : i32, i32
  }
}

</mosaic_0001>

<llo_original>
// kernel: tpu_custom_call.1
$region0: #{tpu_custom_call.1}
  #allocation0 [shape = 'u32[]', space=smem, size = 0x4, offset = 0x4, fixed_abs, tag = 'smem constant byte address 0x4 - core index']
  #allocation1 [shape = 'u32[144,128]{1,0:T(1,128)}', space=vmem, size = 0x12000, scoped, tag = 'internal scratch']
  %s0 = inlined_call_operand.hbm [shape: f32[2,128], index: 0, kind: input, shape index: {}]
  %s1 = inlined_call_operand.vmem [shape: f32[1,128], index: 1, kind: input, shape index: {}]
  %s2 = inlined_call_operand.vmem [shape: f32[1,128], index: 2, kind: input, shape index: {}]
  %s3 = inlined_call_operand.hbm [shape: f32[2,128], index: 3, kind: output, shape index: {}]
  %s4 = sld [smem:[#allocation0]]
  $region26: #{tpu_custom_call.1} parent=0
    _
  %s6 = ssub.s32 1, %s4
  %s7 = scalar_select 0, %s6, %s4
  $region1: #{tpu_custom_call.1} parent=0
    #allocation2 [shape = 'u8[1024]{0}', space=vmem, size = 0x400, scoped, tag = 'input window, operand 0, single buffered']
    #allocation3 [shape = 's32[1]{0}', space=sflag, size = 0x4, scoped, tag = 'scoped memory for tpu_custom_call.1']
    #allocation4 [shape = 's32[1]{0}', space=sflag, size = 0x4, scoped, tag = 'scoped memory for tpu_custom_call.1']
    #allocation5 [shape = 'u8[1024]{0}', space=vmem, size = 0x400, scoped, tag = 'output window, operand 0, single buffered']
    %8 = vsyncpa [#allocation3], 0
    %9 = vsyncpa [#allocation4], 0
    // Predicated region
    $region2: #{tpu_custom_call.1} parent=1 // pred_check
      _
    $region3: #{tpu_custom_call.1} parent=1 // pred_check_branch
      %11 = sbr.rel (0) target = $region5
    $region4: #{tpu_custom_call.1} parent=1 // pred_region
      %s13 = ssub.s32 32, 32
      %14 = vsyncadd [#allocation3], %s13
      %s16 = sshll.u32 [#allocation2], 4
      %s17 = int_to_ptr.vmem [resolvable:$true] %s16
      %19 = dma.hbm_to_vmem [thread:$0]  %s0, 32, %s17, [#allocation3]
    $region5: #{tpu_custom_call.1} parent=1 // pred_fallthru
      _
    // Predicated region
    $region6: #{tpu_custom_call.1} parent=1 // pred_check
      _
    $region7: #{tpu_custom_call.1} parent=1 // pred_check_branch
      %21 = sbr.rel (0) target = $region9
    $region8: #{tpu_custom_call.1} parent=1 // pred_region
      _
    $region9: #{tpu_custom_call.1} parent=1 // pred_fallthru
      _
    // Predicated region
    $region10: #{tpu_custom_call.1} parent=1 // pred_check
      _
    $region11: #{tpu_custom_call.1} parent=1 // pred_check_branch
      %23 = sbr.rel (0) target = $region13
    $region12: #{tpu_custom_call.1} parent=1 // pred_region
      _
    $region13: #{tpu_custom_call.1} parent=1 // pred_fallthru
      _
    // Predicated region
    $region14: #{tpu_custom_call.1} parent=1 // pred_check
      _
    $region15: #{tpu_custom_call.1} parent=1 // pred_check_branch
      %25 = sbr.rel (0) target = $region17
    $region16: #{tpu_custom_call.1} parent=1 // pred_region
      %26 = dma.done [#allocation3], 32
    $region17: #{tpu_custom_call.1} parent=1 // pred_fallthru
      _
    %v27 = vld [vmem:[%s1] sm:$0x1]
    %v28 = vmul.f32 %v27, 1.442695
    %v29 = vpow.pop %v28
    %v30 = vld [vmem:[%s2] sm:$0x1]
    %v31 = vld [vmem:[#allocation2] sm:$0x3]
    %v33 = vlaneseq
    %v34 = vshrl.u32 %v33, 7
    %v35 = vsub.s32 0, %v34
    %v36 = vrot.slane %v29, %v35
    %v38 = vmul.f32 %v31, %v36
    %v40 = vlaneseq
    %v41 = vshrl.u32 %v40, 7
    %v42 = vsub.s32 0, %v41
    %v43 = vrot.slane %v30, %v42
    %v45 = vadd.f32 %v38, %v43
    %46 = vst [vmem:[#allocation5] sm:$0x3] %v45
    // Predicated region
    $region18: #{tpu_custom_call.1} parent=1 // pred_check
      _
    $region19: #{tpu_custom_call.1} parent=1 // pred_check_branch
      %48 = sbr.rel (0) target = $region21
    $region20: #{tpu_custom_call.1} parent=1 // pred_region
      %s50 = ssub.s32 32, 32
      %51 = vsyncadd [#allocation4], %s50
      %s53 = sshll.u32 [#allocation5], 4
      %s54 = int_to_ptr.vmem [resolvable:$true] %s53
      %56 = dma.vmem_to_hbm [thread:$0]  %s54, 32, %s3, [#allocation4]
    $region21: #{tpu_custom_call.1} parent=1 // pred_fallthru
      _
    // Predicated region
    $region22: #{tpu_custom_call.1} parent=1 // pred_check
      _
    $region23: #{tpu_custom_call.1} parent=1 // pred_check_branch
      %58 = sbr.rel (0) target = $region25
    $region24: #{tpu_custom_call.1} parent=1 // pred_region
      %59 = dma.done [#allocation4], 32
    $region25: #{tpu_custom_call.1} parent=1 // pred_fallthru
      _
    %60 = vsyncpa [#allocation3], 1
    %61 = vsyncpa [#allocation4], 1

</llo_original>
